<compile_context>
chip_gen: v6e
topology: v6e:2x2x1
jax: 0.10.0
libtpu: 0.0.40
codegen_flags: <defaults>
</compile_context>

<pallas_src>
import functools

import jax
import jax.numpy as jnp
from jax.experimental import pallas as pl
from jax.experimental.pallas import tpu as pltpu


# -----------------------------------------------------------------------------
# Kernel
# -----------------------------------------------------------------------------
def _linear_attn_kernel(l_ref, g_ref, w_ref, c_ref, gout_ref, *,
                        normalize_attn, inv_m):
    """Fused 1x1 conv + softmax/sigmoid attention + attention pooling.

    l_ref, g_ref : (C, M)   one batch element, channels x flattened spatial
    w_ref        : (1, C)   1x1x1 conv weight as a row vector
    c_ref        : (1, M)   attention logits output (raw conv output)
    gout_ref     : (1, C)   attention-pooled feature output
    """
    l = l_ref[...]                                   # (C, M) f32
    x = l + g_ref[...]                               # (C, M)

    # 1x1 conv over channels == row-vector matmul: (1,C) @ (C,M) -> (1,M)
    c = jnp.dot(w_ref[...], x, preferred_element_type=jnp.float32)
    c_ref[...] = c.astype(c_ref.dtype)

    if normalize_attn:
        # Softmax over the spatial (lane) axis.
        c_max = jnp.max(c, axis=-1, keepdims=True)
        e = jnp.exp(c - c_max)
        a = e / jnp.sum(e, axis=-1, keepdims=True)   # (1, M)
    else:
        a = 1.0 / (1.0 + jnp.exp(-c))                # sigmoid, (1, M)

    # Attention pooling: g[c] = sum_m a[m] * l[c, m]; contraction over M on the
    # MXU (K = W*H), result lands directly in (1, C) row layout.
    g_out = jnp.einsum('sm,cm->sc', a, l, preferred_element_type=jnp.float32)
    if not normalize_attn:
        g_out = g_out * inv_m                        # adaptive_avg_pool2d -> mean
    gout_ref[...] = g_out.astype(gout_ref.dtype)


# -----------------------------------------------------------------------------
# Wrapper
# -----------------------------------------------------------------------------
def linear_attention_block(l, g, w, *, normalize_attn=True):
    """l, g: (N, C, W, H) float32 (PyTorch NCHW); w: Conv2d weight (1, C, 1, 1).

    Returns (c, g_out) with c: (N, 1, W, H), g_out: (N, C), matching the
    PyTorch module's forward.
    """
    N, C, W, H = l.shape
    M = W * H
    lf = l.reshape(N, C, M).astype(jnp.float32)      # free reshape (contiguous)
    gf = g.reshape(N, C, M).astype(jnp.float32)
    w_row = w.reshape(1, C).astype(jnp.float32)

    kernel = functools.partial(_linear_attn_kernel,
                               normalize_attn=normalize_attn,
                               inv_m=1.0 / float(M))

    c_flat, g_flat = pl.pallas_call(
        kernel,
        out_shape=(jax.ShapeDtypeStruct((N, 1, M), jnp.float32),
                   jax.ShapeDtypeStruct((N, 1, C), jnp.float32)),
        grid=(N,),
        in_specs=[
            pl.BlockSpec((None, C, M), lambda n: (n, 0, 0)),   # l  (batch-sliced)
            pl.BlockSpec((None, C, M), lambda n: (n, 0, 0)),   # g
            pl.BlockSpec((1, C), lambda n: (0, 0)),            # conv weight
        ],
        out_specs=(
            pl.BlockSpec((None, 1, M), lambda n: (n, 0, 0)),   # c logits
            pl.BlockSpec((None, 1, C), lambda n: (n, 0, 0)),   # pooled g
        ),
        compiler_params=pltpu.CompilerParams(
            dimension_semantics=("parallel",)),
    )(lf, gf, w_row)

    return c_flat.reshape(N, 1, W, H), g_flat.reshape(N, C)


# -----------------------------------------------------------------------------
# Pure-JAX reference (elementwise math only, for a numerical sanity check)
# -----------------------------------------------------------------------------
def _ref_forward(l, g, w, normalize_attn):
    N, C, W, H = l.shape
    wv = w.reshape(1, C, 1, 1)
    x = l + g
    c = jnp.sum(x * wv, axis=1, keepdims=True)                 # (N,1,W,H)
    if normalize_attn:
        a = jax.nn.softmax(c.reshape(N, 1, W * H), axis=2).reshape(N, 1, W, H)
    else:
        a = jax.nn.sigmoid(c)
    gm = a * l
    if normalize_attn:
        g_out = gm.reshape(N, C, W * H).sum(axis=2)
    else:
        g_out = gm.mean(axis=(2, 3))
    return c, g_out


# -----------------------------------------------------------------------------
if __name__ == "__main__":
    key = jax.random.PRNGKey(0)
    k_l, k_g, k_w = jax.random.split(key, 3)

    N, C, W, H = 2, 32, 16, 16
    l = jax.random.normal(k_l, (N, C, W, H), jnp.float32)
    g = jax.random.normal(k_g, (N, C, W, H), jnp.float32)
    w = 0.2 * jax.random.normal(k_w, (1, C, 1, 1), jnp.float32)  # Conv2d(C,1,1,bias=False)

    # normalize_attn=True (module default): softmax attention + spatial sum.
    fwd = jax.jit(functools.partial(linear_attention_block, normalize_attn=True))
    c_out, g_out = fwd(l, g, w)
    c_out, g_out = jax.block_until_ready((c_out, g_out))
    assert c_out.shape == (N, 1, W, H), c_out.shape
    assert g_out.shape == (N, C), g_out.shape

    c_ref, g_ref = _ref_forward(l, g, w, True)
    err = max(float(jnp.max(jnp.abs(c_out - c_ref))),
              float(jnp.max(jnp.abs(g_out - g_ref))))
    assert err < 1e-3, f"normalize_attn=True mismatch vs reference: {err}"

    # normalize_attn=False: sigmoid attention + spatial mean.
    fwd2 = jax.jit(functools.partial(linear_attention_block, normalize_attn=False))
    c2, g2 = jax.block_until_ready(fwd2(l, g, w))
    c2_ref, g2_ref = _ref_forward(l, g, w, False)
    err2 = max(float(jnp.max(jnp.abs(c2 - c2_ref))),
               float(jnp.max(jnp.abs(g2 - g2_ref))))
    assert err2 < 1e-3, f"normalize_attn=False mismatch vs reference: {err2}"

    print("KERNEL_OK")
</pallas_src>

<mosaic_0001>
module attributes {stable_mosaic.version = 11 : i64} {
  func.func @_linear_attn_kernel(%arg0: i32, %arg1: memref<1x32x256xf32, #tpu.memory_space<vmem>>, %arg2: memref<1x32x256xf32, #tpu.memory_space<vmem>>, %arg3: memref<1x32xf32, #tpu.memory_space<vmem>>, %arg4: memref<1x1x256xf32, #tpu.memory_space<vmem>>, %arg5: memref<1x1x32xf32, #tpu.memory_space<vmem>>) attributes {dimension_semantics = [#tpu.dimension_semantics<parallel>], iteration_bounds = array<i64: 2>, scalar_prefetch = 0 : i64, scratch_operands = 0 : i64, tpu.core_type = #tpu.core_type<tc>, window_params = [{transform_indices = @transform_0, window_bounds = array<i64: 1, 32, 256>}, {transform_indices = @transform_1, window_bounds = array<i64: 1, 32, 256>}, {pipeline_mode = #tpu.pipeline_mode<synchronous>, transform_indices = @transform_2, window_bounds = array<i64: 1, 32>}, {transform_indices = @transform_3, window_bounds = array<i64: 1, 1, 256>}, {transform_indices = @transform_4, window_bounds = array<i64: 1, 1, 32>}]} {
    %c0 = arith.constant 0 : index
    %c0_0 = arith.constant 0 : index
    %c0_1 = arith.constant 0 : index
    %0 = vector.load %arg1[%c0, %c0_0, %c0_1] : memref<1x32x256xf32, #tpu.memory_space<vmem>>, vector<1x32x256xf32>
    %1 = vector.shape_cast %0 : vector<1x32x256xf32> to vector<32x256xf32>
    %c0_2 = arith.constant 0 : index
    %c0_3 = arith.constant 0 : index
    %c0_4 = arith.constant 0 : index
    %2 = vector.load %arg2[%c0_2, %c0_3, %c0_4] : memref<1x32x256xf32, #tpu.memory_space<vmem>>, vector<1x32x256xf32>
    %3 = vector.shape_cast %2 : vector<1x32x256xf32> to vector<32x256xf32>
    %4 = arith.addf %1, %3 : vector<32x256xf32>
    %c0_5 = arith.constant 0 : index
    %c0_6 = arith.constant 0 : index
    %5 = vector.load %arg3[%c0_5, %c0_6] : memref<1x32xf32, #tpu.memory_space<vmem>>, vector<1x32xf32>
    %cst = arith.constant dense<0.000000e+00> : vector<1x256xf32>
    %6 = tpu.matmul %5, %4, %cst {dimension_numbers = #tpu.dot_dimension_numbers<[1], [0], [0], [1], [0, 0, 1, 1], [], []>} : vector<1x32xf32>, vector<32x256xf32>, vector<1x256xf32> -> vector<1x256xf32>
    %c0_7 = arith.constant 0 : index
    %c0_8 = arith.constant 0 : index
    %c0_9 = arith.constant 0 : index
    %7 = vector.load %arg4[%c0_7, %c0_8, %c0_9] : memref<1x1x256xf32, #tpu.memory_space<vmem>>, vector<1x1x256xf32>
    %8 = vector.shape_cast %7 : vector<1x1x256xf32> to vector<1x256xf32>
    %9 = vector.shape_cast %6 : vector<1x256xf32> to vector<1x1x256xf32>
    tpu.vector_store %arg4[%c0_7, %c0_8, %c0_9], %9 {strides = array<i32>} : memref<1x1x256xf32, #tpu.memory_space<vmem>>, vector<1x1x256xf32>,
    %cst_10 = arith.constant dense<0xFF800000> : vector<1xf32>
    %10 = vector.multi_reduction <maximumf>, %6, %cst_10 [1] : vector<1x256xf32> to vector<1xf32>
    %11 = vector.shape_cast %10 : vector<1xf32> to vector<1x1xf32>
    %12 = vector.broadcast %11 : vector<1x1xf32> to vector<1x256xf32>
    %13 = arith.subf %6, %12 : vector<1x256xf32>
    %14 = math.exp %13 : vector<1x256xf32>
    %cst_11 = arith.constant dense<0.000000e+00> : vector<1xf32>
    %15 = vector.multi_reduction <add>, %14, %cst_11 [1] : vector<1x256xf32> to vector<1xf32>
    %16 = vector.shape_cast %15 : vector<1xf32> to vector<1x1xf32>
    %17 = vector.broadcast %16 : vector<1x1xf32> to vector<1x256xf32>
    %18 = arith.divf %14, %17 : vector<1x256xf32>
    "tpu.trace_start"() <{level = 10 : i32, message = "sm,cm->sc"}> : () -> ()
    %cst_12 = arith.constant dense<0.000000e+00> : vector<1x32xf32>
    %19 = tpu.matmul %18, %1, %cst_12 {dimension_numbers = #tpu.dot_dimension_numbers<[1], [1], [0], [0], [0, 0, 1, 0], [], []>} : vector<1x256xf32>, vector<32x256xf32>, vector<1x32xf32> -> vector<1x32xf32>
    "tpu.trace_stop"() : () -> ()
    %c0_13 = arith.constant 0 : index
    %c0_14 = arith.constant 0 : index
    %c0_15 = arith.constant 0 : index
    %20 = vector.load %arg5[%c0_13, %c0_14, %c0_15] : memref<1x1x32xf32, #tpu.memory_space<vmem>>, vector<1x1x32xf32>
    %21 = vector.shape_cast %20 : vector<1x1x32xf32> to vector<1x32xf32>
    %22 = vector.shape_cast %19 : vector<1x32xf32> to vector<1x1x32xf32>
    tpu.vector_store %arg5[%c0_13, %c0_14, %c0_15], %22 {strides = array<i32>} : memref<1x1x32xf32, #tpu.memory_space<vmem>>, vector<1x1x32xf32>,
    return
  }
  func.func @transform_0(%arg0: i32) -> (i32, i32, i32) {
    %c0_i32 = arith.constant 0 : i32
    %c0_i32_0 = arith.constant 0 : i32
    %c0_i32_1 = arith.constant 0 : i32
    return %arg0, %c0_i32, %c0_i32_0 : i32, i32, i32
  }
  func.func @transform_1(%arg0: i32) -> (i32, i32, i32) {
    %c0_i32 = arith.constant 0 : i32
    %c0_i32_0 = arith.constant 0 : i32
    %c0_i32_1 = arith.constant 0 : i32
    return %arg0, %c0_i32, %c0_i32_0 : i32, i32, i32
  }
  func.func @transform_2(%arg0: i32) -> (i32, i32) {
    %c0_i32 = arith.constant 0 : i32
    %c0_i32_0 = arith.constant 0 : i32
    %c0_i32_1 = arith.constant 0 : i32
    return %c0_i32, %c0_i32_0 : i32, i32
  }
  func.func @transform_3(%arg0: i32) -> (i32, i32, i32) {
    %c0_i32 = arith.constant 0 : i32
    %c0_i32_0 = arith.constant 0 : i32
    %c0_i32_1 = arith.constant 0 : i32
    return %arg0, %c0_i32, %c0_i32_0 : i32, i32, i32
  }
  func.func @transform_4(%arg0: i32) -> (i32, i32, i32) {
    %c0_i32 = arith.constant 0 : i32
    %c0_i32_0 = arith.constant 0 : i32
    %c0_i32_1 = arith.constant 0 : i32
    return %arg0, %c0_i32, %c0_i32_0 : i32, i32, i32
  }
}

</mosaic_0001>

<llo_original>
// kernel: linear_attention_block.1
$region0: #{linear_attention_block.1}
  #allocation0 [shape = 'u32[]', space=smem, size = 0x4, offset = 0x4, fixed_abs, tag = 'smem constant byte address 0x4 - core index']
  #allocation1 [shape = 'u32[144,128]{1,0:T(1,128)}', space=vmem, size = 0x12000, scoped, tag = 'internal scratch']
  %s0 = inlined_call_operand.vmem [shape: f32[2,32,256], index: 0, kind: input, shape index: {}]
  %s1 = inlined_call_operand.vmem [shape: f32[2,32,256], index: 1, kind: input, shape index: {}]
  %s2 = inlined_call_operand.vmem [shape: f32[1,32], index: 2, kind: input, shape index: {}]
  %s3 = inlined_call_operand.vmem [shape: f32[2,1,256], index: 3, kind: output, shape index: {0}]
  %s4 = inlined_call_operand.hbm [shape: f32[2,1,32], index: 4, kind: output, shape index: {1}]
  %5 = xla_tuple %s3, %s4
  %s6 = sld [smem:[#allocation0]]
  $region53: #{linear_attention_block.1} parent=0
    _
  %s8 = ssub.s32 1, %s6
  %s9 = scalar_select 0, %s8, %s6
  $region1: #{linear_attention_block.1} parent=0
    #allocation2 [shape = 'u8[1024]{0}', space=vmem, size = 0x400, scoped, tag = 'output window, operand 1']
    #allocation3 [shape = 's32[2]{0}', space=sflag, size = 0x8, scoped, tag = 'scoped memory for linear_attention_block.1']
    %10 = vsyncpa [#allocation3], 0
    %s11 = scalar_lea.sflag [#allocation3], 1
    %12 = vsyncpa %s11, 0
    loop: start=0, step=1, limit=4
    $region2: #{linear_attention_block.1} parent=1 // loop_pre_header
      _
    $region3: #{linear_attention_block.1} parent=1 // loop_header
      %s14 = sphi 0, %s18
      %p15 = scmp.ge.s32.totalorder %s14, 4
      %s24 = sphi 0, %s26
      %s27 = sphi 0, %s24
      %s28 = sphi 0, %s27
      %s44 = sphi 0, %s28
      %s50 = sphi 0, %s52
      %s53 = sphi 0, %s50
      %s54 = sphi 0, %s53
      %s70 = sphi 0, %s54
      %s74 = sphi 0, %s74
      %s76 = sphi 0, %s74
      %s77 = sphi 0, %s76
      %s91 = sphi 0, %s77
      %s97 = sphi 0, %s99
      %s100 = sphi 0, %s97
      %s101 = sphi 0, %s100
      %s117 = sphi 0, %s101
      %s123 = sphi 0, %s125
      %s126 = sphi 0, %s123
      %s127 = sphi 0, %s126
      %s143 = sphi 0, %s127
    $region4: #{linear_attention_block.1} parent=1 // loop_header_branch
      %17 = sbr.rel (%p15) target = $region8
    $region5: #{linear_attention_block.1} parent=1 // loop_body
      %s19 = ssub.s32 %s14, 1
      %s20 = ssub.s32 %s14, 2
      %s21 = sadd.s32 %s14, 1
      %s22 = ssub.s32 %s14, %s21
      %p23 = scmp.eq.s32.totalorder %s22, 0
      %s25 = sadd.s32 %s24, 1
      %s26 = scalar_select %p23, %s24, %s25
      %p29 = pneg %p23
      %p30 = scmp.eq.s32.totalorder %s14, 1
      %p31 = por %p29, %p30
      %p32 = scmp.ne.s32.totalorder %s24, %s27
      %p33 = scmp.eq.s32.totalorder %s14, 0
      %p34 = por %p32, %p33
      %p35 = scmp.ne.s32.totalorder %s24, %s27
      %p36 = scmp.eq.s32.totalorder %s19, 1
      %p37 = por %p35, %p36
      %p38 = scmp.ne.s32.totalorder %s27, %s28
      %p39 = scmp.eq.s32.totalorder %s19, 0
      %p40 = por %p38, %p39
      %p41 = scmp.ne.s32.totalorder %s27, %s28
      %p42 = scmp.eq.s32.totalorder %s20, 1
      %p43 = por %p41, %p42
      %p45 = scmp.ne.s32.totalorder %s28, %s44
      %p46 = scmp.eq.s32.totalorder %s20, 0
      %p47 = por %p45, %p46
      %s48 = ssub.s32 %s14, %s21
      %p49 = scmp.eq.s32.totalorder %s48, 0
      %s51 = sadd.s32 %s50, 1
      %s52 = scalar_select %p49, %s50, %s51
      %p55 = pneg %p49
      %p56 = scmp.eq.s32.totalorder %s14, 1
      %p57 = por %p55, %p56
      %p58 = scmp.ne.s32.totalorder %s50, %s53
      %p59 = scmp.eq.s32.totalorder %s14, 0
      %p60 = por %p58, %p59
      %p61 = scmp.ne.s32.totalorder %s50, %s53
      %p62 = scmp.eq.s32.totalorder %s19, 1
      %p63 = por %p61, %p62
      %p64 = scmp.ne.s32.totalorder %s53, %s54
      %p65 = scmp.eq.s32.totalorder %s19, 0
      %p66 = por %p64, %p65
      %p67 = scmp.ne.s32.totalorder %s53, %s54
      %p68 = scmp.eq.s32.totalorder %s20, 1
      %p69 = por %p67, %p68
      %p71 = scmp.ne.s32.totalorder %s54, %s70
      %p72 = scmp.eq.s32.totalorder %s20, 0
      %p73 = por %p71, %p72
      %s75 = sadd.s32 %s74, 1
      %p78 = scmp.eq.s32.totalorder %s14, 1
      %p79 = scmp.ne.s32.totalorder %s74, %s76
      %p80 = scmp.eq.s32.totalorder %s14, 0
      %p81 = por %p79, %p80
      %p82 = scmp.ne.s32.totalorder %s74, %s76
      %p83 = scmp.eq.s32.totalorder %s19, 1
      %p84 = por %p82, %p83
      %p85 = scmp.ne.s32.totalorder %s76, %s77
      %p86 = scmp.eq.s32.totalorder %s19, 0
      %p87 = por %p85, %p86
      %p88 = scmp.ne.s32.totalorder %s76, %s77
      %p89 = scmp.eq.s32.totalorder %s20, 1
      %p90 = por %p88, %p89
      %p92 = scmp.ne.s32.totalorder %s77, %s91
      %p93 = scmp.eq.s32.totalorder %s20, 0
      %p94 = por %p92, %p93
      %s95 = ssub.s32 %s14, %s21
      %p96 = scmp.eq.s32.totalorder %s95, 0
      %s98 = sadd.s32 %s97, 1
      %s99 = scalar_select %p96, %s97, %s98
      %p102 = pneg %p96
      %p103 = scmp.eq.s32.totalorder %s14, 1
      %p104 = por %p102, %p103
      %p105 = scmp.ne.s32.totalorder %s97, %s100
      %p106 = scmp.eq.s32.totalorder %s14, 0
      %p107 = por %p105, %p106
      %p108 = scmp.ne.s32.totalorder %s97, %s100
      %p109 = scmp.eq.s32.totalorder %s19, 1
      %p110 = por %p108, %p109
      %p111 = scmp.ne.s32.totalorder %s100, %s101
      %p112 = scmp.eq.s32.totalorder %s19, 0
      %p113 = por %p111, %p112
      %p114 = scmp.ne.s32.totalorder %s100, %s101
      %p115 = scmp.eq.s32.totalorder %s20, 1
      %p116 = por %p114, %p115
      %p118 = scmp.ne.s32.totalorder %s101, %s117
      %p119 = scmp.eq.s32.totalorder %s20, 0
      %p120 = por %p118, %p119
      %s121 = ssub.s32 %s14, %s21
      %p122 = scmp.eq.s32.totalorder %s121, 0
      %s124 = sadd.s32 %s123, 1
      %s125 = scalar_select %p122, %s123, %s124
      %p128 = pneg %p122
      %p129 = scmp.eq.s32.totalorder %s14, 1
      %p130 = por %p128, %p129
      %p131 = scmp.ne.s32.totalorder %s123, %s126
      %p132 = scmp.eq.s32.totalorder %s14, 0
      %p133 = por %p131, %p132
      %p134 = scmp.ne.s32.totalorder %s123, %s126
      %p135 = scmp.eq.s32.totalorder %s19, 1
      %p136 = por %p134, %p135
      %p137 = scmp.ne.s32.totalorder %s126, %s127
      %p138 = scmp.eq.s32.totalorder %s19, 0
      %p139 = por %p137, %p138
      %p140 = scmp.ne.s32.totalorder %s126, %s127
      %p141 = scmp.eq.s32.totalorder %s20, 1
      %p142 = por %p140, %p141
      %p144 = scmp.ne.s32.totalorder %s127, %s143
      %p145 = scmp.eq.s32.totalorder %s20, 0
      %p146 = por %p144, %p145
      %p147 = scmp.le.s32.totalorder 1, %s14
      %p148 = scmp.lt.s32.totalorder %s14, 3
      %p149 = pnand %p147, %p148
      %p150 = pneg %p149
      // Predicated region
      $region9: #{linear_attention_block.1} parent=5 // pred_check
        _
      $region10: #{linear_attention_block.1} parent=5 // pred_check_branch
        %152 = sbr.rel (%p149) target = $region12
      $region11: #{linear_attention_block.1} parent=5 // pred_region
        %s153 = ssub.s32 %s14, 1
        // Predicated region
        $region13: #{linear_attention_block.1} parent=11 // pred_check
          %p154 = pneg %p87
        $region14: #{linear_attention_block.1} parent=11 // pred_check_branch
          %156 = sbr.rel (%p154) target = $region16
        $region15: #{linear_attention_block.1} parent=11 // pred_region
          _
        $region16: #{linear_attention_block.1} parent=11 // pred_fallthru
          _
      $region12: #{linear_attention_block.1} parent=5 // pred_fallthru
        _
      %p157 = scmp.lt.s32.totalorder %s14, 2
      // Predicated region
      $region17: #{linear_attention_block.1} parent=5 // pred_check
        %p158 = pneg %p157
      $region18: #{linear_attention_block.1} parent=5 // pred_check_branch
        %160 = sbr.rel (%p158) target = $region20
      $region19: #{linear_attention_block.1} parent=5 // pred_region
        // Predicated region
        $region21: #{linear_attention_block.1} parent=19 // pred_check
          %p161 = pneg %p34
        $region22: #{linear_attention_block.1} parent=19 // pred_check_branch
          %163 = sbr.rel (%p161) target = $region24
        $region23: #{linear_attention_block.1} parent=19 // pred_region
          %p164 = scmp.lt.s32.totalorder %s14, 1
          %s165 = scalar_select %p164, %s14, 1
          %s166 = smul.addr %s165, 8
          %s167 = smul.addr %s166, 8
          %s168 = scalar_lea.vmem %s0, %s167
        $region24: #{linear_attention_block.1} parent=19 // pred_fallthru
          _
        // Predicated region
        $region25: #{linear_attention_block.1} parent=19 // pred_check
          %p169 = pneg %p60
        $region26: #{linear_attention_block.1} parent=19 // pred_check_branch
          %171 = sbr.rel (%p169) target = $region28
        $region27: #{linear_attention_block.1} parent=19 // pred_region
          %p172 = scmp.lt.s32.totalorder %s14, 1
          %s173 = scalar_select %p172, %s14, 1
          %s174 = smul.addr %s173, 8
          %s175 = smul.addr %s174, 8
          %s176 = scalar_lea.vmem %s1, %s175
        $region28: #{linear_attention_block.1} parent=19 // pred_fallthru
          _
      $region20: #{linear_attention_block.1} parent=5 // pred_fallthru
        _
      %p177 = scmp.le.s32.totalorder 1, %s14
      %p178 = scmp.lt.s32.totalorder %s14, 3
      %p179 = pnand %p177, %p178
      %p180 = pneg %p179
      // Predicated region
      $region29: #{linear_attention_block.1} parent=5 // pred_check
        _
      $region30: #{linear_attention_block.1} parent=5 // pred_check_branch
        %182 = sbr.rel (%p179) target = $region32
      $region31: #{linear_attention_block.1} parent=5 // pred_region
        %s183 = ssub.s32 %s14, 1
        %p184 = scmp.lt.s32.totalorder %s19, 1
        %s185 = scalar_select %p184, %s19, 1
        %s186 = smul.addr %s185, 8
        %s187 = smul.addr %s186, 8
        %s188 = scalar_lea.vmem %s0, %s187
        %p189 = pneg %p40
        %p190 = pneg %p37
        %p191 = scmp.lt.s32.totalorder %s19, 1
        %s192 = scalar_select %p191, %s19, 1
        %s193 = smul.addr %s192, 8
        %s194 = smul.addr %s193, 8
        %s195 = scalar_lea.vmem %s1, %s194
        %p196 = pneg %p66
        %p197 = pneg %p63
        %p198 = pneg %p87
        %p199 = pneg %p84
        %p200 = pneg %p113
        %p201 = pneg %p110
        %p202 = scmp.lt.s32.totalorder %s19, 1
        %s203 = scalar_select %p202, %s19, 1
        %s204 = smul.addr %s203, 2
        %s205 = scalar_lea.vmem %s3, %s204
        %p206 = pneg %p139
        %p207 = pneg %p136
        %s208 = sand.u32 %s126, 1
        %s209 = scalar_lea.sflag [#allocation3], %s208
        %s210 = sand.u32 %s126, 1
        %s211 = scalar_lea.vmem [#allocation2], %s210
        %p212 = scmp.lt.s32.totalorder %s19, 1
        %s213 = scalar_select %p212, %s19, 1
        %s214 = smul.addr %s213, 8
        %s215 = smul.addr %s214, 8
        %s216 = scalar_lea.vmem %s0, %s215
        %p217 = scmp.lt.s32.totalorder %s19, 1
        %s218 = scalar_select %p217, %s19, 1
        %s219 = smul.addr %s218, 8
        %s220 = smul.addr %s219, 8
        %s221 = scalar_lea.vmem %s1, %s220
        %p222 = scmp.lt.s32.totalorder %s19, 1
        %s223 = scalar_select %p222, %s19, 1
        %s224 = smul.addr %s223, 2
        %s225 = scalar_lea.vmem %s3, %s224
        %v226 = vld [vmem:[%s216] sm:$0xff]
        %v227 = vld [vmem:[%s216 + $0x8] sm:$0xff]
        %v228 = vld [vmem:[%s216 + $0x10] sm:$0xff]
        %v229 = vld [vmem:[%s216 + $0x18] sm:$0xff]
        %v230 = vld [vmem:[%s216 + $0x20] sm:$0xff]
        %v231 = vld [vmem:[%s216 + $0x28] sm:$0xff]
        %v232 = vld [vmem:[%s216 + $0x30] sm:$0xff]
        %v233 = vld [vmem:[%s216 + $0x38] sm:$0xff]
        %v234 = vld [vmem:[%s221] sm:$0xff]
        %v235 = vld [vmem:[%s221 + $0x8] sm:$0xff]
        %v236 = vld [vmem:[%s221 + $0x10] sm:$0xff]
        %v237 = vld [vmem:[%s221 + $0x18] sm:$0xff]
        %v238 = vld [vmem:[%s221 + $0x20] sm:$0xff]
        %v239 = vld [vmem:[%s221 + $0x28] sm:$0xff]
        %v240 = vld [vmem:[%s221 + $0x30] sm:$0xff]
        %v241 = vld [vmem:[%s221 + $0x38] sm:$0xff]
        %v242 = vadd.f32 %v226, %v234
        %v243 = vadd.f32 %v227, %v235
        %v244 = vadd.f32 %v228, %v236
        %v245 = vadd.f32 %v229, %v237
        %v246 = vadd.f32 %v230, %v238
        %v247 = vadd.f32 %v231, %v239
        %v248 = vadd.f32 %v232, %v240
        %v249 = vadd.f32 %v233, %v241
        %v250 = vld [vmem:[%s2] sm:$0x1]
        %vm251 = vcmask 261120
        %v253 = vsel %vm251, %v250, 0
        %255 = vmatprep.subr.mxu0 0.0
        %256 = vmatpush1.msra.mxu0 0.0
        %257 = vmatprep.subr.mxu0 0.0
        %258 = vmatpush1.msra.mxu0 0.0
        %259 = vmatprep.subr.mxu0 0.0
        %260 = vmatpush1.msra.mxu0 0.0
        %261 = vmatprep.subr.mxu0 0.0
        %262 = vmatpush1.msra.mxu0 0.0
        %263 = vmatprep.subr.mxu0 0.0
        %264 = vmatpush1.msra.mxu0 0.0
        %265 = vmatprep.subr.mxu0 0.0
        %266 = vmatpush1.msra.mxu0 0.0
        %267 = vmatprep.subr.mxu0 0.0
        %268 = vmatpush1.msra.mxu0 0.0
        %269 = vmatprep.subr.mxu0 0.0
        %270 = vmatpush1.msra.mxu0 0.0
        %271 = vmatprep.subr.mxu0 0.0
        %272 = vmatpush1.msra.mxu0 0.0
        %273 = vmatprep.subr.mxu0 0.0
        %274 = vmatpush1.msra.mxu0 0.0
        %275 = vmatprep.subr.mxu0 0.0
        %276 = vmatpush1.msra.mxu0 0.0
        %277 = vmatprep.subr.mxu0 0.0
        %278 = vmatpush1.msra.mxu0 0.0
        %279 = vmatprep.subr.mxu0 %v249
        %280 = vmatpush1.msra.mxu0 %v248
        %281 = vmatprep.subr.mxu0 %v247
        %282 = vmatpush1.msra.mxu0 %v246
        %283 = vmatprep.subr.mxu0 %v245
        %284 = vmatpush1.msra.mxu0 %v244
        %285 = vmatprep.subr.mxu0 %v243
        %286 = vmatpush1.msra.mxu0 %v242
        %287 = vmatprep.subr.mxu0 0.0
        %288 = vmatpush2.msra.mxu0 0.0
        %289 = vmatprep.subr.mxu0 0.0
        %290 = vmatpush2.msra.mxu0 0.0
        %291 = vmatprep.subr.mxu0 0.0
        %292 = vmatpush2.msra.mxu0 0.0
        %293 = vmatprep.subr.mxu0 0.0
        %294 = vmatpush2.msra.mxu0 0.0
        %295 = vmatprep.subr.mxu0 0.0
        %296 = vmatpush2.msra.mxu0 0.0
        %297 = vmatprep.subr.mxu0 0.0
        %298 = vmatpush2.msra.mxu0 0.0
        %299 = vmatprep.subr.mxu0 0.0
        %300 = vmatpush2.msra.mxu0 0.0
        %301 = vmatprep.subr.mxu0 0.0
        %302 = vmatpush2.msra.mxu0 0.0
        %303 = vmatprep.subr.mxu0 0.0
        %304 = vmatpush2.msra.mxu0 0.0
        %305 = vmatprep.subr.mxu0 0.0
        %306 = vmatpush2.msra.mxu0 0.0
        %307 = vmatprep.subr.mxu0 0.0
        %308 = vmatpush2.msra.mxu0 0.0
        %309 = vmatprep.subr.mxu0 0.0
        %310 = vmatpush2.msra.mxu0 0.0
        %311 = vmatprep.subr.mxu0 0.0
        %312 = vmatpush2.msra.mxu0 0.0
        %313 = vmatprep.subr.mxu0 0.0
        %314 = vmatpush2.msra.mxu0 0.0
        %315 = vmatprep.subr.mxu0 0.0
        %316 = vmatpush2.msra.mxu0 0.0
        %317 = vmatprep.subr.mxu0 0.0
        %318 = vmatpush2.msra.mxu0 0.0
        %319 = vmatprep.mubr.f32.mxu0 0.0
        %320 = vmatmul.mubr.f32.gmra.mxu0 %v253
        %v321 = vpop.f32.mrf.mxu0
        %v322 = vadd.f32 0.0, %v321
        %v323 = vpop.f32.mrf.mxu0
        %v324 = vadd.f32 0.0, %v323
        %325 = vdwg.mxu0
        %v328 = vcombine.low %v322, %v324
        %v330 = vunpack.c.l.s4 1966171168
        %v331 = vunpack.c.0.s8 %v330
        %v332 = vlaneseq
        %v333 = vshrl.u32 %v332, 7
        %v334 = vsub.s32 %v331, %v333
        %v335 = vrot.slane %v328, %v334
        %v337 = vunpack.c.l.s4 1966171168
        %v338 = vunpack.c.0.s8 %v337
        %v339 = vlaneseq
        %v340 = vshrl.u32 %v339, 7
        %v341 = vsub.s32 %v338, %v340
        %v342 = vrot.slane %v335, %v341
        %v344 = vlaneseq
        %vm345 = vcmp.ge.s32.totalorder %v344, 0
        %vm346 = vcmp.lt.s32.totalorder %v344, 256
        %vm347 = vmand %vm345, %vm346
        %348 = vst.msk [vmem:[%s225] sm:$0x3] %vm347, %v342
        %vm349 = vcmask 1040384
        %v350 = vsel %vm349, %v322, -inf
        %v351 = vsel %vm349, %v324, -inf
        %v352 = vmax.f32 %v350, %v351
        %353 = vmax.xlane.f32.xlu0 %v352
        %v354 = vpop.xlane.xlu0 %353
        %v355 = vsub.f32 %v322, %v354
        %v356 = vsub.f32 %v324, %v354
        %v357 = vmul.f32 %v355, 1.442695
        %v358 = vpow.pop %v357
        %v359 = vmul.f32 %v356, 1.442695
        %v360 = vpow.pop %v359
        %v361 = vsel %vm349, %v358, 0.0
        %v362 = vsel %vm349, %v360, 0.0
        %v363 = vadd.f32 %v361, %v362
        %364 = vadd.xlane.f32.xlu0 %v363
        %v365 = vpop.xlane.xlu0 %364
        %v366 = vrcp.pop %v365
        %v367 = vmul.f32 %v358, %v366
        %v368 = vmul.f32 %v360, %v366
        %369 = vmatprep.subr.mxu0 0.0
        %370 = vmatpush1.xpose.msra.mxu0 0.0
        %371 = vmatprep.subr.mxu0 0.0
        %372 = vmatpush1.xpose.msra.mxu0 0.0
        %373 = vmatprep.subr.mxu0 0.0
        %374 = vmatpush1.xpose.msra.mxu0 0.0
        %375 = vmatprep.subr.mxu0 0.0
        %376 = vmatpush1.xpose.msra.mxu0 0.0
        %377 = vmatprep.subr.mxu0 0.0
        %378 = vmatpush1.xpose.msra.mxu0 0.0
        %379 = vmatprep.subr.mxu0 0.0
        %380 = vmatpush1.xpose.msra.mxu0 0.0
        %381 = vmatprep.subr.mxu0 0.0
        %382 = vmatpush1.xpose.msra.mxu0 0.0
        %383 = vmatprep.subr.mxu0 0.0
        %384 = vmatpush1.xpose.msra.mxu0 0.0
        %385 = vmatprep.subr.mxu0 0.0
        %386 = vmatpush1.xpose.msra.mxu0 0.0
        %387 = vmatprep.subr.mxu0 0.0
        %388 = vmatpush1.xpose.msra.mxu0 0.0
        %389 = vmatprep.subr.mxu0 0.0
        %390 = vmatpush1.xpose.msra.mxu0 0.0
        %391 = vmatprep.subr.mxu0 0.0
        %392 = vmatpush1.xpose.msra.mxu0 0.0
        %393 = vmatprep.subr.mxu0 %v233
        %394 = vmatpush1.xpose.msra.mxu0 %v232
        %395 = vmatprep.subr.mxu0 %v231
        %396 = vmatpush1.xpose.msra.mxu0 %v230
        %397 = vmatprep.subr.mxu0 %v229
        %398 = vmatpush1.xpose.msra.mxu0 %v228
        %399 = vmatprep.subr.mxu0 %v227
        %400 = vmatpush1.xpose.msra.mxu0 %v226
        %401 = vmatprep.subr.mxu0 0.0
        %402 = vmatpush2.xpose.msra.mxu0 0.0
        %403 = vmatprep.subr.mxu0 0.0
        %404 = vmatpush2.xpose.msra.mxu0 0.0
        %405 = vmatprep.subr.mxu0 0.0
        %406 = vmatpush2.xpose.msra.mxu0 0.0
        %407 = vmatprep.subr.mxu0 0.0
        %408 = vmatpush2.xpose.msra.mxu0 0.0
        %409 = vmatprep.subr.mxu0 0.0
        %410 = vmatpush2.xpose.msra.mxu0 0.0
        %411 = vmatprep.subr.mxu0 0.0
        %412 = vmatpush2.xpose.msra.mxu0 0.0
        %413 = vmatprep.subr.mxu0 0.0
        %414 = vmatpush2.xpose.msra.mxu0 0.0
        %415 = vmatprep.subr.mxu0 0.0
        %416 = vmatpush2.xpose.msra.mxu0 0.0
        %417 = vmatprep.subr.mxu0 0.0
        %418 = vmatpush2.xpose.msra.mxu0 0.0
        %419 = vmatprep.subr.mxu0 0.0
        %420 = vmatpush2.xpose.msra.mxu0 0.0
        %421 = vmatprep.subr.mxu0 0.0
        %422 = vmatpush2.xpose.msra.mxu0 0.0
        %423 = vmatprep.subr.mxu0 0.0
        %424 = vmatpush2.xpose.msra.mxu0 0.0
        %425 = vmatprep.subr.mxu0 0.0
        %426 = vmatpush2.xpose.msra.mxu0 0.0
        %427 = vmatprep.subr.mxu0 0.0
        %428 = vmatpush2.xpose.msra.mxu0 0.0
        %429 = vmatprep.subr.mxu0 0.0
        %430 = vmatpush2.xpose.msra.mxu0 0.0
        %431 = vmatprep.subr.mxu0 0.0
        %432 = vmatpush2.xpose.msra.mxu0 0.0
        %433 = vmatprep.mubr.f32.mxu0 %v368
        %434 = vmatmul.mubr.f32.gmra.mxu0 %v367
        %v435 = vpop.f32.mrf.mxu0
        %v436 = vadd.f32 0.0, %v435
        %v437 = vpop.f32.mrf.mxu0
        %438 = vdwg.mxu0
        %vm439 = vcmask 253952
        %440 = vst.msk [vmem:[%s211] sm:$0x1] %vm439, %v436
        %p441 = scmp.lt.s32.totalorder %s19, 1
        %s442 = scalar_select %p441, %s19, 1
        %s443 = smul.addr %s442, 2
        %s444 = scalar_lea.vmem %s3, %s443
        %s445 = sand.u32 %s126, 1
        %s446 = scalar_lea.sflag [#allocation3], %s445
        %s447 = sand.u32 %s126, 1
        %s448 = scalar_lea.vmem [#allocation2], %s447
        // Predicated region
        $region33: #{linear_attention_block.1} parent=31 // pred_check
          %p449 = pneg %p110
        $region34: #{linear_attention_block.1} parent=31 // pred_check_branch
          %451 = sbr.rel (%p449) target = $region36
        $region35: #{linear_attention_block.1} parent=31 // pred_region
          _
        $region36: #{linear_attention_block.1} parent=31 // pred_fallthru
          _
        // Predicated region
        $region37: #{linear_attention_block.1} parent=31 // pred_check
          %p452 = pneg %p136
        $region38: #{linear_attention_block.1} parent=31 // pred_check_branch
          %454 = sbr.rel (%p452) target = $region40
        $region39: #{linear_attention_block.1} parent=31 // pred_region
          %s456 = ssub.s32 16, 16
          %457 = vsyncadd %s446, %s456
          %s458 = smul.addr %s19, 16
          %s459 = scalar_lea.hbm %s4, %s458
          %s461 = sshll.u32 %s448, 4
          %s462 = int_to_ptr.vmem [resolvable:$true] %s461
          %464 = dma.vmem_to_hbm [thread:$0]  %s462, 16, %s459, %s446
        $region40: #{linear_attention_block.1} parent=31 // pred_fallthru
          _
      $region32: #{linear_attention_block.1} parent=5 // pred_fallthru
        _
      %p465 = scmp.le.s32.totalorder 2, %s14
      // Predicated region
      $region41: #{linear_attention_block.1} parent=5 // pred_check
        %p466 = pneg %p465
      $region42: #{linear_attention_block.1} parent=5 // pred_check_branch
        %468 = sbr.rel (%p466) target = $region44
      $region43: #{linear_attention_block.1} parent=5 // pred_region
        %s469 = ssub.s32 %s14, 2
        // Predicated region
        $region45: #{linear_attention_block.1} parent=43 // pred_check
          %p470 = pneg %p116
        $region46: #{linear_attention_block.1} parent=43 // pred_check_branch
          %472 = sbr.rel (%p470) target = $region48
        $region47: #{linear_attention_block.1} parent=43 // pred_region
          %p473 = scmp.lt.s32.totalorder %s20, 1
          %s474 = scalar_select %p473, %s20, 1
          %s475 = smul.addr %s474, 2
          %s476 = scalar_lea.vmem %s3, %s475
        $region48: #{linear_attention_block.1} parent=43 // pred_fallthru
          _
        // Predicated region
        $region49: #{linear_attention_block.1} parent=43 // pred_check
          %p477 = pneg %p142
        $region50: #{linear_attention_block.1} parent=43 // pred_check_branch
          %479 = sbr.rel (%p477) target = $region52
        $region51: #{linear_attention_block.1} parent=43 // pred_region
          %s480 = sand.u32 %s127, 1
          %s481 = scalar_lea.sflag [#allocation3], %s480
          %s482 = sand.u32 %s127, 1
          %s483 = scalar_lea.vmem [#allocation2], %s482
          %484 = dma.done %s481, 16
        $region52: #{linear_attention_block.1} parent=43 // pred_fallthru
          _
      $region44: #{linear_attention_block.1} parent=5 // pred_fallthru
        _
    $region6: #{linear_attention_block.1} parent=1 // loop_footer
      %s18 = sadd.s32 1, %s14
    $region7: #{linear_attention_block.1} parent=1 // loop_footer_branch
      %13 = sbr.rel target = $region3
    $region8: #{linear_attention_block.1} parent=1 // loop_exit
      _
    %485 = vsyncpa [#allocation3], 1
    %s486 = scalar_lea.sflag [#allocation3], 1
    %487 = vsyncpa %s486, 1

</llo_original>
